<compile_context>
chip_gen: v6e
topology: v6e:2x2x1
jax: 0.10.0
libtpu: 0.0.40
codegen_flags: <defaults>
</compile_context>

<pallas_src>
import functools

import jax
import jax.numpy as jnp
from jax.experimental import pallas as pl
from jax.experimental.pallas import tpu as pltpu

# ---- packed-parameter layout: (104 rows x 128 lanes), f32 ------------------
H1, H2 = 64, 32          # hidden widths
F_MAX = 8                # max supported input features (Auto MPG has 7)

R_W1 = 0                 # rows [ 0,  8), lanes [0, 64) : W1 (input_dim, 64)
R_W2 = 8                 # rows [ 8, 72), lanes [0, 32) : W2 (64, 32)
R_B1 = 72                # row   72     , lanes [0, 64) : b1
R_B2 = 80                # row   80     , lanes [0, 32) : b2
R_W3 = 88                # row   88     , lanes [0, 32) : w3 (stored as a row)
R_B3 = 96                # row   96     , lane 0        : b3
PACK_ROWS = 104          # multiple of 8
PACK_COLS = 128          # full lane width -> lane-dense parameter DMA


def mlp_kernel(x_ref, p_ref, o_ref, *, n_feat):
    # x tile: (tb, n_feat) f32, batch along sublanes (native layout, no
    # wrapper transpose).
    x = x_ref[...]

    # Grid-invariant packed params (constant index_map -> VMEM-resident).
    w1 = p_ref[R_W1:R_W1 + n_feat, 0:H1].astype(jnp.bfloat16)   # (F, 64)
    w2 = p_ref[R_W2:R_W2 + H1, 0:H2].astype(jnp.bfloat16)       # (64, 32)
    b1 = p_ref[R_B1:R_B1 + 1, 0:H1]                             # (1, 64) f32
    b2 = p_ref[R_B2:R_B2 + 1, 0:H2]                             # (1, 32) f32
    w3 = p_ref[R_W3:R_W3 + 1, 0:H2]                             # (1, 32) f32
    b3 = p_ref[R_B3:R_B3 + 1, 0:1]                              # (1, 1)  f32

    # fc1 + ReLU: batch-major lhs streams through the MXU, W1 is the
    # stationary rhs (loaded once, reused for the whole tile / all steps).
    # bf16 matmul inputs, f32 accumulation; bias/ReLU math stays f32.
    h1 = jnp.dot(x.astype(jnp.bfloat16), w1,
                 preferred_element_type=jnp.float32)             # (tb, 64)
    h1 = jnp.maximum(h1 + b1, 0.0)
    # TODO(synk): dropout(p=0.2) is identity at inference (eval mode); the
    # training-mode RNG mask is intentionally not applied.

    # fc2 + ReLU: FLOP-dominant layer; W2 is the stationary rhs.
    h2 = jnp.dot(h1.astype(jnp.bfloat16), w2,
                 preferred_element_type=jnp.float32)             # (tb, 32)
    h2 = jnp.maximum(h2 + b2, 0.0)

    # fc3 (32 -> 1): VPU multiply + XLU lane reduction -> keeps the single
    # output-column op off the MXU entirely.
    y = jnp.sum(h2 * w3, axis=-1, keepdims=True)                 # (tb, 1)
    o_ref[...] = y + b3


def _pick_batch_tile(batch, block_b):
    """Pick (tile, padded_batch): tile is a multiple of 8 dividing padded_batch.

    Keeps >= 2 grid steps for non-tiny batches so dimension_semantics=
    ("parallel",) can shard the 1-D grid across both v7x TensorCores."""
    b_al = pl.cdiv(batch, 8) * 8
    if b_al <= 256:
        return b_al, b_al                        # single small step
    tb = min(block_b, pl.cdiv(b_al, 16) * 8)     # ~ceil(b/2), 8-aligned
    return tb, pl.cdiv(b_al, tb) * tb


def auto_regression_forward(x, packed_params, *, block_b=4096):
    """Run the fused MLP kernel.

    x:             (B, input_dim) float array, input_dim <= 8
    packed_params: (104, 128) float32 buffer from pack_params()
    returns        (B, 1) float32
    """
    batch, n_feat = x.shape
    assert n_feat <= F_MAX, n_feat
    assert block_b % 8 == 0, block_b

    tb, b_pad = _pick_batch_tile(batch, block_b)

    x = x.astype(jnp.float32)
    if b_pad != batch:
        # Zero-pad the batch to a whole number of tiles.  Padding rows compute
        # junk that is sliced off below; ideally the upstream producer emits a
        # tile-aligned batch so this copy never happens.
        x = jnp.zeros((b_pad, n_feat), jnp.float32).at[:batch].set(x)

    out = pl.pallas_call(
        functools.partial(mlp_kernel, n_feat=n_feat),
        out_shape=jax.ShapeDtypeStruct((b_pad, 1), jnp.float32),
        grid_spec=pltpu.PrefetchScalarGridSpec(
            num_scalar_prefetch=0,
            grid=(b_pad // tb,),
            in_specs=[
                # Native-layout x tile: last dim == full feature dim (legal),
                # batch tiled along sublanes.
                pl.BlockSpec((tb, n_feat), lambda i: (i, 0)),
                # Packed params: constant index_map -> fetched once and kept
                # VMEM-resident across all grid steps.
                pl.BlockSpec((PACK_ROWS, PACK_COLS), lambda i: (0, 0)),
            ],
            out_specs=pl.BlockSpec((tb, 1), lambda i: (i, 0)),
        ),
        compiler_params=pltpu.CompilerParams(
            dimension_semantics=("parallel",),   # shard batch tiles across TCs
            vmem_limit_bytes=40 * 1024 * 1024,
        ),
    )(x, packed_params)

    return out[:batch]


def init_params(key, input_dim):
    """PyTorch nn.Linear default init: U(-1/sqrt(fan_in), 1/sqrt(fan_in)).
    Weights stored as (fan_in, fan_out); biases as (fan_out,)."""
    ks = jax.random.split(key, 6)

    def linear(kw, kb, fan_in, fan_out):
        bound = 1.0 / jnp.sqrt(float(fan_in))
        w = jax.random.uniform(kw, (fan_in, fan_out), jnp.float32, -bound, bound)
        b = jax.random.uniform(kb, (fan_out,), jnp.float32, -bound, bound)
        return w, b

    w1, b1 = linear(ks[0], ks[1], input_dim, H1)
    w2, b2 = linear(ks[2], ks[3], H1, H2)
    w3, b3 = linear(ks[4], ks[5], H2, 1)
    return dict(w1=w1, b1=b1, w2=w2, b2=b2, w3=w3, b3=b3)


def pack_params(p):
    """Pack all 6 parameter tensors into one (104, 128) f32 buffer
    (batch-major weight orientation, 8-aligned sublane offsets)."""
    f = p["w1"].shape[0]
    assert f <= F_MAX, f
    buf = jnp.zeros((PACK_ROWS, PACK_COLS), jnp.float32)
    buf = buf.at[R_W1:R_W1 + f, :H1].set(p["w1"])              # W1 (F, 64)
    buf = buf.at[R_W2:R_W2 + H1, :H2].set(p["w2"])             # W2 (64, 32)
    buf = buf.at[R_B1, :H1].set(p["b1"])                       # b1 (64,)
    buf = buf.at[R_B2, :H2].set(p["b2"])                       # b2 (32,)
    buf = buf.at[R_W3, :H2].set(p["w3"].reshape(H2))           # w3 (32,)
    buf = buf.at[R_B3, 0].set(p["b3"][0])                      # b3 scalar
    return buf


def reference_forward(x, p):
    h1 = jnp.maximum(x @ p["w1"] + p["b1"], 0.0)
    h2 = jnp.maximum(h1 @ p["w2"] + p["b2"], 0.0)
    return h2 @ p["w3"] + p["b3"]


if __name__ == "__main__":
    key = jax.random.PRNGKey(0)
    k_x, k_p = jax.random.split(key)

    batch = 8
    input_dim = 7  # UCI Auto MPG: 7 input features

    x = jax.random.normal(k_x, (batch, input_dim), jnp.float32)
    params = init_params(k_p, input_dim)
    packed = pack_params(params)

    out = auto_regression_forward(x, packed)
    out = jax.block_until_ready(out)

    ref = reference_forward(x, params)
    assert out.shape == (batch, 1), out.shape
    # bf16 matmul inputs (f32 accumulation) -> regression-head tolerance ~1e-2.
    assert jnp.allclose(out, ref, atol=5e-2, rtol=5e-2), (out, ref)

    print("KERNEL_OK")
</pallas_src>

<mosaic_0001>
module attributes {stable_mosaic.version = 11 : i64} {
  func.func @mlp_kernel(%arg0: i32, %arg1: memref<8x7xf32, #tpu.memory_space<vmem>>, %arg2: memref<104x128xf32, #tpu.memory_space<vmem>>, %arg3: memref<8x1xf32, #tpu.memory_space<vmem>>) attributes {dimension_semantics = [#tpu.dimension_semantics<parallel>], iteration_bounds = array<i64: 1>, scalar_prefetch = 0 : i64, scratch_operands = 0 : i64, tpu.core_type = #tpu.core_type<tc>, window_params = [{transform_indices = @transform_0, window_bounds = array<i64: 8, 7>}, {pipeline_mode = #tpu.pipeline_mode<synchronous>, transform_indices = @transform_1, window_bounds = array<i64: 104, 128>}, {transform_indices = @transform_2, window_bounds = array<i64: 8, 1>}]} {
    %c0 = arith.constant 0 : index
    %c0_0 = arith.constant 0 : index
    %0 = vector.load %arg1[%c0, %c0_0] : memref<8x7xf32, #tpu.memory_space<vmem>>, vector<8x7xf32>
    %c0_1 = arith.constant 0 : index
    %c0_2 = arith.constant 0 : index
    %1 = vector.load %arg2[%c0_1, %c0_2] : memref<104x128xf32, #tpu.memory_space<vmem>>, vector<7x64xf32>
    %2 = arith.truncf %1 : vector<7x64xf32> to vector<7x64xbf16>
    %c8 = arith.constant 8 : index
    %c0_3 = arith.constant 0 : index
    %3 = vector.load %arg2[%c8, %c0_3] : memref<104x128xf32, #tpu.memory_space<vmem>>, vector<64x32xf32>
    %4 = arith.truncf %3 : vector<64x32xf32> to vector<64x32xbf16>
    %c72 = arith.constant 72 : index
    %c0_4 = arith.constant 0 : index
    %5 = vector.load %arg2[%c72, %c0_4] : memref<104x128xf32, #tpu.memory_space<vmem>>, vector<1x64xf32>
    %c80 = arith.constant 80 : index
    %c0_5 = arith.constant 0 : index
    %6 = vector.load %arg2[%c80, %c0_5] : memref<104x128xf32, #tpu.memory_space<vmem>>, vector<1x32xf32>
    %c88 = arith.constant 88 : index
    %c0_6 = arith.constant 0 : index
    %7 = vector.load %arg2[%c88, %c0_6] : memref<104x128xf32, #tpu.memory_space<vmem>>, vector<1x32xf32>
    %c96 = arith.constant 96 : index
    %c0_7 = arith.constant 0 : index
    %8 = vector.load %arg2[%c96, %c0_7] : memref<104x128xf32, #tpu.memory_space<vmem>>, vector<1x1xf32>
    %9 = arith.truncf %0 : vector<8x7xf32> to vector<8x7xbf16>
    %cst = arith.constant dense<0.000000e+00> : vector<8x64xf32>
    %10 = tpu.matmul %9, %2, %cst {dimension_numbers = #tpu.dot_dimension_numbers<[1], [0], [0], [1], [0, 0, 1, 1], [], []>} : vector<8x7xbf16>, vector<7x64xbf16>, vector<8x64xf32> -> vector<8x64xf32>
    %11 = vector.broadcast %5 : vector<1x64xf32> to vector<8x64xf32>
    %12 = arith.addf %10, %11 : vector<8x64xf32>
    %cst_8 = arith.constant 0.000000e+00 : f32
    %13 = vector.broadcast %cst_8 : f32 to vector<8x64xf32>
    %14 = arith.maximumf %12, %13 : vector<8x64xf32>
    %15 = arith.truncf %14 : vector<8x64xf32> to vector<8x64xbf16>
    %cst_9 = arith.constant dense<0.000000e+00> : vector<8x32xf32>
    %16 = tpu.matmul %15, %4, %cst_9 {dimension_numbers = #tpu.dot_dimension_numbers<[1], [0], [0], [1], [0, 0, 1, 1], [], []>} : vector<8x64xbf16>, vector<64x32xbf16>, vector<8x32xf32> -> vector<8x32xf32>
    %17 = vector.broadcast %6 : vector<1x32xf32> to vector<8x32xf32>
    %18 = arith.addf %16, %17 : vector<8x32xf32>
    %cst_10 = arith.constant 0.000000e+00 : f32
    %19 = vector.broadcast %cst_10 : f32 to vector<8x32xf32>
    %20 = arith.maximumf %18, %19 : vector<8x32xf32>
    %21 = vector.broadcast %7 : vector<1x32xf32> to vector<8x32xf32>
    %22 = arith.mulf %20, %21 : vector<8x32xf32>
    %cst_11 = arith.constant dense<0.000000e+00> : vector<8xf32>
    %23 = vector.multi_reduction <add>, %22, %cst_11 [1] : vector<8x32xf32> to vector<8xf32>
    %24 = vector.shape_cast %23 : vector<8xf32> to vector<8x1xf32>
    %25 = vector.broadcast %8 : vector<1x1xf32> to vector<8x1xf32>
    %26 = arith.addf %24, %25 : vector<8x1xf32>
    %c0_12 = arith.constant 0 : index
    %c0_13 = arith.constant 0 : index
    %27 = vector.load %arg3[%c0_12, %c0_13] : memref<8x1xf32, #tpu.memory_space<vmem>>, vector<8x1xf32>
    tpu.vector_store %arg3[%c0_12, %c0_13], %26 {strides = array<i32>} : memref<8x1xf32, #tpu.memory_space<vmem>>, vector<8x1xf32>,
    return
  }
  func.func @transform_0(%arg0: i32) -> (i32, i32) {
    %c0_i32 = arith.constant 0 : i32
    %c0_i32_0 = arith.constant 0 : i32
    return %arg0, %c0_i32 : i32, i32
  }
  func.func @transform_1(%arg0: i32) -> (i32, i32) {
    %c0_i32 = arith.constant 0 : i32
    %c0_i32_0 = arith.constant 0 : i32
    %c0_i32_1 = arith.constant 0 : i32
    return %c0_i32, %c0_i32_0 : i32, i32
  }
  func.func @transform_2(%arg0: i32) -> (i32, i32) {
    %c0_i32 = arith.constant 0 : i32
    %c0_i32_0 = arith.constant 0 : i32
    return %arg0, %c0_i32 : i32, i32
  }
}

</mosaic_0001>

<llo_original>
// kernel: tpu_custom_call.1
$region0: #{tpu_custom_call.1}
  #allocation0 [shape = 'u32[]', space=smem, size = 0x4, offset = 0x4, fixed_abs, tag = 'smem constant byte address 0x4 - core index']
  #allocation1 [shape = 'u32[144,128]{1,0:T(1,128)}', space=vmem, size = 0x12000, scoped, tag = 'internal scratch']
  %s0 = inlined_call_operand.hbm [shape: f32[8,7], index: 0, kind: input, shape index: {}]
  %s1 = inlined_call_operand.hbm [shape: f32[104,128], index: 1, kind: input, shape index: {}]
  %s2 = inlined_call_operand.vmem [shape: f32[8,1], index: 2, kind: output, shape index: {}]
  %s3 = sld [smem:[#allocation0]]
  $region26: #{tpu_custom_call.1} parent=0
    _
  %s5 = ssub.s32 1, %s3
  %s6 = scalar_select 0, %s5, %s3
  $region1: #{tpu_custom_call.1} parent=0
    #allocation2 [shape = 'u8[4096]{0}', space=vmem, size = 0x1000, scoped, tag = 'input window, operand 0, single buffered']
    #allocation3 [shape = 's32[1]{0}', space=sflag, size = 0x4, scoped, tag = 'scoped memory for tpu_custom_call.1']
    #allocation4 [shape = 'u8[53248]{0}', space=vmem, size = 0xd000, scoped, tag = 'input window, operand 1, single buffered']
    #allocation5 [shape = 's32[1]{0}', space=sflag, size = 0x4, scoped, tag = 'scoped memory for tpu_custom_call.1']
    %7 = vsyncpa [#allocation3], 0
    %8 = vsyncpa [#allocation5], 0
    // Predicated region
    $region2: #{tpu_custom_call.1} parent=1 // pred_check
      _
    $region3: #{tpu_custom_call.1} parent=1 // pred_check_branch
      %10 = sbr.rel (0) target = $region5
    $region4: #{tpu_custom_call.1} parent=1 // pred_region
      %s12 = ssub.s32 128, 128
      %13 = vsyncadd [#allocation3], %s12
      %s15 = sshll.u32 [#allocation2], 4
      %s16 = int_to_ptr.vmem [resolvable:$true] %s15
      %18 = dma.hbm_to_vmem [thread:$0]  %s0, 128, %s16, [#allocation3]
    $region5: #{tpu_custom_call.1} parent=1 // pred_fallthru
      _
    // Predicated region
    $region6: #{tpu_custom_call.1} parent=1 // pred_check
      _
    $region7: #{tpu_custom_call.1} parent=1 // pred_check_branch
      %20 = sbr.rel (0) target = $region9
    $region8: #{tpu_custom_call.1} parent=1 // pred_region
      %s22 = ssub.s32 1664, 1664
      %23 = vsyncadd [#allocation5], %s22
      %s24 = sshll.u32 [#allocation4], 4
      %s25 = int_to_ptr.vmem [resolvable:$true] %s24
      %30 = dma.hbm_to_vmem [thread:$0]  %s1, 1664, %s25, [#allocation5], 128, 128, 8
    $region9: #{tpu_custom_call.1} parent=1 // pred_fallthru
      _
    // Predicated region
    $region10: #{tpu_custom_call.1} parent=1 // pred_check
      _
    $region11: #{tpu_custom_call.1} parent=1 // pred_check_branch
      %32 = sbr.rel (0) target = $region13
    $region12: #{tpu_custom_call.1} parent=1 // pred_region
      %33 = dma.done [#allocation3], 128
    $region13: #{tpu_custom_call.1} parent=1 // pred_fallthru
      _
    // Predicated region
    $region14: #{tpu_custom_call.1} parent=1 // pred_check
      _
    $region15: #{tpu_custom_call.1} parent=1 // pred_check_branch
      %35 = sbr.rel (0) target = $region17
    $region16: #{tpu_custom_call.1} parent=1 // pred_region
      %36 = dma.done [#allocation5], 1664
    $region17: #{tpu_custom_call.1} parent=1 // pred_fallthru
      _
    %v38 = vld [vmem:[#allocation2] sm:$0xff]
    %v39 = vld [vmem:[#allocation4] sm:$0x7f]
    %v40 = vpack.c.bf16 %v39, %v39
    %v41 = vld [vmem:[#allocation4 + $0x8] sm:$0xff]
    %v42 = vld [vmem:[#allocation4 + $0x10] sm:$0xff]
    %v43 = vld [vmem:[#allocation4 + $0x18] sm:$0xff]
    %v44 = vld [vmem:[#allocation4 + $0x20] sm:$0xff]
    %v45 = vld [vmem:[#allocation4 + $0x28] sm:$0xff]
    %v46 = vld [vmem:[#allocation4 + $0x30] sm:$0xff]
    %v47 = vld [vmem:[#allocation4 + $0x38] sm:$0xff]
    %v48 = vld [vmem:[#allocation4 + $0x40] sm:$0xff]
    %v49 = vpack.c.bf16 %v42, %v41
    %v50 = vpack.c.bf16 %v44, %v43
    %v51 = vpack.c.bf16 %v46, %v45
    %v52 = vpack.c.bf16 %v48, %v47
    %v53 = vld [vmem:[#allocation4 + $0x48] sm:$0x1]
    %v54 = vld [vmem:[#allocation4 + $0x50] sm:$0x1]
    %v55 = vld [vmem:[#allocation4 + $0x58] sm:$0x1]
    %v56 = vld [vmem:[#allocation4 + $0x60] sm:$0x1]
    %v57 = vpack.c.bf16 %v38, %v38
    %v58 = vlaneseq
    %v59 = vshrl.u32 %v58, 7
    %v60 = vsub.s32 0, %v59
    %v61 = vrot.slane %v53, %v60
    %vm62 = vcmask 56320
    %v64 = vsel %vm62, %v57, 0
    %vm66 = vcmask 1042432
    %vm67 = vcmask 1043456
    %v68 = vsel %vm66, 4294967295, 65535
    %v69 = vsel %vm67, %v68, 0
    %v71 = vand.u32 %v40, %v69
    %73 = vmatprep.subr.bf16.mxu0 0
    %74 = vmatpush1.bf16.msra.mxu0 0
    %75 = vmatprep.subr.bf16.mxu0 0
    %76 = vmatpush1.bf16.msra.mxu0 0
    %77 = vmatprep.subr.bf16.mxu0 0
    %78 = vmatpush1.bf16.msra.mxu0 0
    %79 = vmatprep.subr.bf16.mxu0 0
    %80 = vmatpush1.bf16.msra.mxu0 0
    %81 = vmatprep.subr.bf16.mxu0 0
    %82 = vmatpush1.bf16.msra.mxu0 0
    %83 = vmatprep.subr.bf16.mxu0 0
    %84 = vmatpush1.bf16.msra.mxu0 0
    %85 = vmatprep.subr.bf16.mxu0 0
    %86 = vmatpush1.bf16.msra.mxu0 0
    %87 = vmatprep.subr.bf16.mxu0 0
    %88 = vmatpush1.bf16.msra.mxu0 %v71
    %89 = vmatprep.subr.bf16.mxu0 0
    %90 = vmatpush2.bf16.msra.mxu0 0
    %91 = vmatprep.subr.bf16.mxu0 0
    %92 = vmatpush2.bf16.msra.mxu0 0
    %93 = vmatprep.subr.bf16.mxu0 0
    %94 = vmatpush2.bf16.msra.mxu0 0
    %95 = vmatprep.subr.bf16.mxu0 0
    %96 = vmatpush2.bf16.msra.mxu0 0
    %97 = vmatprep.subr.bf16.mxu0 0
    %98 = vmatpush2.bf16.msra.mxu0 0
    %99 = vmatprep.subr.bf16.mxu0 0
    %100 = vmatpush2.bf16.msra.mxu0 0
    %101 = vmatprep.subr.bf16.mxu0 0
    %102 = vmatpush2.bf16.msra.mxu0 0
    %103 = vmatprep.subr.bf16.mxu0 0
    %104 = vmatpush2.bf16.msra.mxu0 0
    %105 = vmatprep.mubr.bf16.mxu0 0
    %106 = vmatmul.mubr.bf16.gmra.mxu0 %v64
    %v107 = vpop.f32.mrf.mxu0
    %v108 = vadd.f32 %v61, %v107
    %v109 = vpop.f32.mrf.mxu0
    %v110 = vpop.f32.mrf.mxu0
    %v111 = vpop.f32.mrf.mxu0
    %112 = vdwg.mxu0
    %v113 = vmax.f32 %v108, 0.0
    %v114 = vpack.c.bf16 %v113, %v113
    %v115 = vlaneseq
    %v116 = vshrl.u32 %v115, 7
    %v117 = vsub.s32 0, %v116
    %v118 = vrot.slane %v54, %v117
    %vm119 = vcmask 523264
    %v121 = vsel %vm119, %v114, 0
    %123 = vmatprep.subr.bf16.mxu0 0
    %124 = vmatpush1.bf16.msra.mxu0 0
    %125 = vmatprep.subr.bf16.mxu0 0
    %126 = vmatpush1.bf16.msra.mxu0 0
    %127 = vmatprep.subr.bf16.mxu0 0
    %128 = vmatpush1.bf16.msra.mxu0 0
    %129 = vmatprep.subr.bf16.mxu0 0
    %130 = vmatpush1.bf16.msra.mxu0 0
    %131 = vmatprep.subr.bf16.mxu0 0
    %132 = vmatpush1.bf16.msra.mxu0 %v52
    %133 = vmatprep.subr.bf16.mxu0 0
    %134 = vmatpush1.bf16.msra.mxu0 %v51
    %135 = vmatprep.subr.bf16.mxu0 0
    %136 = vmatpush1.bf16.msra.mxu0 %v50
    %137 = vmatprep.subr.bf16.mxu0 0
    %138 = vmatpush1.bf16.msra.mxu0 %v49
    %139 = vmatprep.subr.bf16.mxu0 0
    %140 = vmatpush2.bf16.msra.mxu0 0
    %141 = vmatprep.subr.bf16.mxu0 0
    %142 = vmatpush2.bf16.msra.mxu0 0
    %143 = vmatprep.subr.bf16.mxu0 0
    %144 = vmatpush2.bf16.msra.mxu0 0
    %145 = vmatprep.subr.bf16.mxu0 0
    %146 = vmatpush2.bf16.msra.mxu0 0
    %147 = vmatprep.subr.bf16.mxu0 0
    %148 = vmatpush2.bf16.msra.mxu0 0
    %149 = vmatprep.subr.bf16.mxu0 0
    %150 = vmatpush2.bf16.msra.mxu0 0
    %151 = vmatprep.subr.bf16.mxu0 0
    %152 = vmatpush2.bf16.msra.mxu0 0
    %153 = vmatprep.subr.bf16.mxu0 0
    %154 = vmatpush2.bf16.msra.mxu0 0
    %155 = vmatprep.mubr.bf16.mxu0 0
    %156 = vmatmul.mubr.bf16.gmra.mxu0 %v121
    %v157 = vpop.f32.mrf.mxu0
    %v158 = vadd.f32 %v118, %v157
    %v159 = vpop.f32.mrf.mxu0
    %v160 = vpop.f32.mrf.mxu0
    %v161 = vpop.f32.mrf.mxu0
    %162 = vdwg.mxu0
    %v163 = vmax.f32 %v158, 0.0
    %v164 = vlaneseq
    %v165 = vshrl.u32 %v164, 7
    %v166 = vsub.s32 0, %v165
    %v167 = vrot.slane %v55, %v166
    %v168 = vmul.f32 %v163, %v167
    %vm169 = vcmask 261120
    %v170 = vsel %vm169, %v168, 0.0
    %171 = vadd.xlane.f32.xlu0 %v170
    %v172 = vpop.xlane.xlu0 %171
    %v173 = vlaneseq
    %v174 = vshrl.u32 %v173, 7
    %v175 = vsub.s32 0, %v174
    %v176 = vrot.slane %v56, %v175
    %v177 = vadd.f32 %v172, %v176
    %vm178 = vcmask 7168
    %179 = vst.msk [vmem:[%s2] sm:$0xff] %vm178, %v177
    // Predicated region
    $region18: #{tpu_custom_call.1} parent=1 // pred_check
      _
    $region19: #{tpu_custom_call.1} parent=1 // pred_check_branch
      %181 = sbr.rel (0) target = $region21
    $region20: #{tpu_custom_call.1} parent=1 // pred_region
      _
    $region21: #{tpu_custom_call.1} parent=1 // pred_fallthru
      _
    // Predicated region
    $region22: #{tpu_custom_call.1} parent=1 // pred_check
      _
    $region23: #{tpu_custom_call.1} parent=1 // pred_check_branch
      %183 = sbr.rel (0) target = $region25
    $region24: #{tpu_custom_call.1} parent=1 // pred_region
      _
    $region25: #{tpu_custom_call.1} parent=1 // pred_fallthru
      _
    %184 = vsyncpa [#allocation3], 1
    %185 = vsyncpa [#allocation5], 1

</llo_original>
